<compile_context>
chip_gen: v6e
topology: v6e:2x2x1
jax: 0.10.0
libtpu: 0.0.40
codegen_flags: <defaults>
</compile_context>

<pallas_src>
import math

import jax
import jax.numpy as jnp
from jax import lax
from jax.experimental import pallas as pl
from jax.experimental.pallas import tpu as pltpu


def _sublane_multiple(dtype):
    """Packed-sublane multiple for a dtype: 8 for f32, 16 for bf16, 32 for int8/fp8."""
    itemsize = jnp.dtype(dtype).itemsize
    return max(8, 32 // max(itemsize, 1))


def _choose_block_rows(seq_len, bd, dtype, target_bytes=2 * 1024 * 1024):
    """Rows per tile: ~target_bytes per buffer, dtype-aligned sublane multiple,
    and capped near seq_len/2 so the grid has >=2 steps (v7x megacore)."""
    sub = _sublane_multiple(dtype)
    row_bytes = bd * jnp.dtype(dtype).itemsize
    rows = max(1, target_bytes // max(row_bytes, 1))
    if seq_len > sub:
        # Keep >=2 grid steps so ("parallel",) can shard across v7x's two
        # TensorCores; costs one extra ~0.35us grid step on v5e/v6e at most.
        half = max(sub, (pl.cdiv(seq_len, 2) // sub) * sub)
        rows = min(rows, half)
    rows = min(rows, seq_len)
    if rows < seq_len:
        # Partial blocks must keep the sublane (second-to-last) dim 8-aligned;
        # round to the dtype's packed multiple for full vreg packing.
        rows = max(sub, (rows // sub) * sub)
    return int(rows)


def _pe_add_kernel(x_ref, freq_ref, sin_sel_ref, cos_sel_ref, o_ref):
    # x_ref / o_ref: (block_rows, batch*d_model) tiles in x.dtype.
    # freq/sin_sel/cos_sel: (1, batch*d_model) f32, resident across grid steps.
    rows, _ = x_ref.shape
    row0 = pl.program_id(0) * rows
    # Position index p for every element of the tile (padded rows of a ragged
    # last block compute garbage pe but their store is masked by Pallas).
    pos = (row0 + lax.broadcasted_iota(jnp.int32, x_ref.shape, 0)).astype(jnp.float32)
    angle = pos * freq_ref[...]                       # sublane-broadcast of (1, bd)
    pe = jnp.sin(angle) * sin_sel_ref[...] + jnp.cos(angle) * cos_sel_ref[...]
    # All pe math in f32; single cast to the activation dtype at the end.
    o_ref[...] = (x_ref[...].astype(jnp.float32) + pe).astype(o_ref.dtype)


def positional_encoding_forward(x, *, max_len=5000, block_rows=None, donate_x=False):
    """x: [seq_len, batch, d_model] -> x + pe[:seq_len]. dropout p=0.0 -> identity."""
    seq_len, batch, d_model = x.shape
    assert d_model % 2 == 0, "d_model must be even (same constraint as the PyTorch module)"
    assert seq_len <= max_len, "seq_len exceeds positional-encoding max_len"

    bd = batch * d_model
    # Lane-dense 2-D view: last dim = batch*d_model (contiguous reshape -> bitcast).
    x2 = x.reshape(seq_len, bd)

    # Tiny per-lane tables (f32): frequency and even/odd selectors, replicated
    # over batch so they line up with the b*D + d flattening of x.  Rebuilt from
    # the call-time (batch, d_model) -> no stale-batch footgun; negligible cost.
    d_idx = jnp.arange(d_model, dtype=jnp.int32)
    freq_d = jnp.exp(((d_idx // 2) * 2).astype(jnp.float32)
                     * (-math.log(10000.0) / d_model))          # exp(2k * -ln(1e4)/D)
    cos_sel_d = (d_idx % 2).astype(jnp.float32)                 # 1.0 on odd lanes -> cos
    sin_sel_d = 1.0 - cos_sel_d                                 # 1.0 on even lanes -> sin
    freq = jnp.tile(freq_d, (batch,)).reshape(1, bd)
    sin_sel = jnp.tile(sin_sel_d, (batch,)).reshape(1, bd)
    cos_sel = jnp.tile(cos_sel_d, (batch,)).reshape(1, bd)

    if block_rows is None:
        block_rows = _choose_block_rows(seq_len, bd, x.dtype)
    grid = (pl.cdiv(seq_len, block_rows),)

    # VMEM budget: x + out tiles double-buffered, plus the resident lane tables.
    itemsize = jnp.dtype(x.dtype).itemsize
    vmem_need = 2 * 2 * block_rows * bd * itemsize + 3 * 2 * bd * 4
    compiler_kwargs = dict(dimension_semantics=("parallel",))
    if vmem_need > 12 * 1024 * 1024:
        # Only override when a very wide batch*d_model threatens the v5e 16 MiB
        # scoped default; clamp well under v7x's 64 MiB physical VMEM.
        compiler_kwargs["vmem_limit_bytes"] = int(min(2 * vmem_need, 60 * 1024 * 1024))

    out2 = pl.pallas_call(
        _pe_add_kernel,
        out_shape=jax.ShapeDtypeStruct((seq_len, bd), x.dtype),
        grid=grid,
        in_specs=[
            pl.BlockSpec((block_rows, bd), lambda i: (i, 0)),   # x tile (streamed)
            pl.BlockSpec((1, bd), lambda i: (0, 0)),            # freq (resident)
            pl.BlockSpec((1, bd), lambda i: (0, 0)),            # sin selector (resident)
            pl.BlockSpec((1, bd), lambda i: (0, 0)),            # cos selector (resident)
        ],
        out_specs=pl.BlockSpec((block_rows, bd), lambda i: (i, 0)),
        compiler_params=pltpu.CompilerParams(**compiler_kwargs),
        # Optional in-place update when the caller donates x to the enclosing jit.
        input_output_aliases=({0: 0} if donate_x else {}),
    )(x2, freq, sin_sel, cos_sel)

    out = out2.reshape(seq_len, batch, d_model)
    # dropout p=0.0 -> identity (no-op).
    # TODO(synk): if dropout p>0 is ever needed, add pltpu.prng_seed + stateful_bernoulli masking.
    return out


if __name__ == "__main__":
    # Small shapes consistent with the forward: [seq_len, batch, d_model].
    # batch * d_model = 128 -> exactly one full lane row per position (lane-dense).
    seq_len, batch, d_model = 8, 4, 32

    key = jax.random.PRNGKey(0)
    x = jax.random.normal(key, (seq_len, batch, d_model), dtype=jnp.float32)

    out = positional_encoding_forward(x, max_len=64)
    out = jax.block_until_ready(out)

    # Pure-JAX reference (same math as the PyTorch module).
    position = jnp.arange(seq_len, dtype=jnp.float32)[:, None]
    div_term = jnp.exp(jnp.arange(0, d_model, 2, dtype=jnp.float32)
                       * (-math.log(10000.0) / d_model))
    pe = jnp.zeros((seq_len, 1, d_model), dtype=jnp.float32)
    pe = pe.at[:, 0, 0::2].set(jnp.sin(position * div_term))
    pe = pe.at[:, 0, 1::2].set(jnp.cos(position * div_term))
    ref = x + pe

    assert out.shape == (seq_len, batch, d_model)
    assert jnp.allclose(out, ref, atol=1e-5, rtol=1e-5), "mismatch vs reference"

    print("KERNEL_OK")
</pallas_src>

<mosaic_0001>
module attributes {stable_mosaic.version = 11 : i64} {
  func.func @_pe_add_kernel(%arg0: i32, %arg1: memref<8x128xf32, #tpu.memory_space<vmem>>, %arg2: memref<1x128xf32, #tpu.memory_space<vmem>>, %arg3: memref<1x128xf32, #tpu.memory_space<vmem>>, %arg4: memref<1x128xf32, #tpu.memory_space<vmem>>, %arg5: memref<8x128xf32, #tpu.memory_space<vmem>>) attributes {dimension_semantics = [#tpu.dimension_semantics<parallel>], iteration_bounds = array<i64: 1>, scalar_prefetch = 0 : i64, scratch_operands = 0 : i64, tpu.core_type = #tpu.core_type<tc>, window_params = [{transform_indices = @transform_0, window_bounds = array<i64: 8, 128>}, {pipeline_mode = #tpu.pipeline_mode<synchronous>, transform_indices = @transform_1, window_bounds = array<i64: 1, 128>}, {pipeline_mode = #tpu.pipeline_mode<synchronous>, transform_indices = @transform_2, window_bounds = array<i64: 1, 128>}, {pipeline_mode = #tpu.pipeline_mode<synchronous>, transform_indices = @transform_3, window_bounds = array<i64: 1, 128>}, {transform_indices = @transform_4, window_bounds = array<i64: 8, 128>}]} {
    %c8_i32 = arith.constant 8 : i32
    %0 = arith.muli %arg0, %c8_i32 : i32
    %1 = tpu.iota {dimensions = array<i32: 0>} : vector<8x128xi32>
    %2 = vector.broadcast %0 : i32 to vector<8x128xi32>
    %3 = arith.addi %2, %1 : vector<8x128xi32>
    %4 = arith.sitofp %3 : vector<8x128xi32> to vector<8x128xf32>
    %c0 = arith.constant 0 : index
    %c0_0 = arith.constant 0 : index
    %5 = vector.load %arg2[%c0, %c0_0] : memref<1x128xf32, #tpu.memory_space<vmem>>, vector<1x128xf32>
    %6 = vector.broadcast %5 : vector<1x128xf32> to vector<8x128xf32>
    %7 = arith.mulf %4, %6 : vector<8x128xf32>
    %8 = math.sin %7 : vector<8x128xf32>
    %c0_1 = arith.constant 0 : index
    %c0_2 = arith.constant 0 : index
    %9 = vector.load %arg3[%c0_1, %c0_2] : memref<1x128xf32, #tpu.memory_space<vmem>>, vector<1x128xf32>
    %10 = vector.broadcast %9 : vector<1x128xf32> to vector<8x128xf32>
    %11 = arith.mulf %8, %10 : vector<8x128xf32>
    %12 = math.cos %7 : vector<8x128xf32>
    %c0_3 = arith.constant 0 : index
    %c0_4 = arith.constant 0 : index
    %13 = vector.load %arg4[%c0_3, %c0_4] : memref<1x128xf32, #tpu.memory_space<vmem>>, vector<1x128xf32>
    %14 = vector.broadcast %13 : vector<1x128xf32> to vector<8x128xf32>
    %15 = arith.mulf %12, %14 : vector<8x128xf32>
    %16 = arith.addf %11, %15 : vector<8x128xf32>
    %c0_5 = arith.constant 0 : index
    %c0_6 = arith.constant 0 : index
    %17 = vector.load %arg1[%c0_5, %c0_6] : memref<8x128xf32, #tpu.memory_space<vmem>>, vector<8x128xf32>
    %18 = arith.addf %17, %16 : vector<8x128xf32>
    %c0_7 = arith.constant 0 : index
    %c0_8 = arith.constant 0 : index
    %19 = vector.load %arg5[%c0_7, %c0_8] : memref<8x128xf32, #tpu.memory_space<vmem>>, vector<8x128xf32>
    tpu.vector_store %arg5[%c0_7, %c0_8], %18 {strides = array<i32>} : memref<8x128xf32, #tpu.memory_space<vmem>>, vector<8x128xf32>,
    return
  }
  func.func @transform_0(%arg0: i32) -> (i32, i32) {
    %c0_i32 = arith.constant 0 : i32
    %c0_i32_0 = arith.constant 0 : i32
    return %arg0, %c0_i32 : i32, i32
  }
  func.func @transform_1(%arg0: i32) -> (i32, i32) {
    %c0_i32 = arith.constant 0 : i32
    %c0_i32_0 = arith.constant 0 : i32
    %c0_i32_1 = arith.constant 0 : i32
    return %c0_i32, %c0_i32_0 : i32, i32
  }
  func.func @transform_2(%arg0: i32) -> (i32, i32) {
    %c0_i32 = arith.constant 0 : i32
    %c0_i32_0 = arith.constant 0 : i32
    %c0_i32_1 = arith.constant 0 : i32
    return %c0_i32, %c0_i32_0 : i32, i32
  }
  func.func @transform_3(%arg0: i32) -> (i32, i32) {
    %c0_i32 = arith.constant 0 : i32
    %c0_i32_0 = arith.constant 0 : i32
    %c0_i32_1 = arith.constant 0 : i32
    return %c0_i32, %c0_i32_0 : i32, i32
  }
  func.func @transform_4(%arg0: i32) -> (i32, i32) {
    %c0_i32 = arith.constant 0 : i32
    %c0_i32_0 = arith.constant 0 : i32
    return %arg0, %c0_i32 : i32, i32
  }
}

</mosaic_0001>

<llo_original>
// kernel: tpu_custom_call.1
$region0: #{tpu_custom_call.1}
  #allocation0 [shape = 'u32[]', space=smem, size = 0x4, offset = 0x4, fixed_abs, tag = 'smem constant byte address 0x4 - core index']
  #allocation1 [shape = 'u32[144,128]{1,0:T(1,128)}', space=vmem, size = 0x12000, scoped, tag = 'internal scratch']
  %s0 = inlined_call_operand.hbm [shape: f32[8,128], index: 0, kind: input, shape index: {}]
  %s1 = inlined_call_operand.vmem [shape: f32[1,128], index: 1, kind: input, shape index: {}]
  %s2 = inlined_call_operand.vmem [shape: f32[1,128], index: 2, kind: input, shape index: {}]
  %s3 = inlined_call_operand.vmem [shape: f32[1,128], index: 3, kind: input, shape index: {}]
  %s4 = inlined_call_operand.hbm [shape: f32[8,128], index: 4, kind: output, shape index: {}]
  %s5 = sld [smem:[#allocation0]]
  $region30: #{tpu_custom_call.1} parent=0
    _
  %s7 = ssub.s32 1, %s5
  %s8 = scalar_select 0, %s7, %s5
  $region1: #{tpu_custom_call.1} parent=0
    #allocation2 [shape = 'u8[4096]{0}', space=vmem, size = 0x1000, scoped, tag = 'input window, operand 0, single buffered']
    #allocation3 [shape = 's32[1]{0}', space=sflag, size = 0x4, scoped, tag = 'scoped memory for tpu_custom_call.1']
    #allocation4 [shape = 's32[1]{0}', space=sflag, size = 0x4, scoped, tag = 'scoped memory for tpu_custom_call.1']
    #allocation5 [shape = 'u8[4096]{0}', space=vmem, size = 0x1000, scoped, tag = 'output window, operand 0, single buffered']
    %9 = vsyncpa [#allocation3], 0
    %10 = vsyncpa [#allocation4], 0
    // Predicated region
    $region2: #{tpu_custom_call.1} parent=1 // pred_check
      _
    $region3: #{tpu_custom_call.1} parent=1 // pred_check_branch
      %12 = sbr.rel (0) target = $region5
    $region4: #{tpu_custom_call.1} parent=1 // pred_region
      %s14 = ssub.s32 128, 128
      %15 = vsyncadd [#allocation3], %s14
      %s17 = sshll.u32 [#allocation2], 4
      %s18 = int_to_ptr.vmem [resolvable:$true] %s17
      %20 = dma.hbm_to_vmem [thread:$0]  %s0, 128, %s18, [#allocation3]
    $region5: #{tpu_custom_call.1} parent=1 // pred_fallthru
      _
    // Predicated region
    $region6: #{tpu_custom_call.1} parent=1 // pred_check
      _
    $region7: #{tpu_custom_call.1} parent=1 // pred_check_branch
      %22 = sbr.rel (0) target = $region9
    $region8: #{tpu_custom_call.1} parent=1 // pred_region
      _
    $region9: #{tpu_custom_call.1} parent=1 // pred_fallthru
      _
    // Predicated region
    $region10: #{tpu_custom_call.1} parent=1 // pred_check
      _
    $region11: #{tpu_custom_call.1} parent=1 // pred_check_branch
      %24 = sbr.rel (0) target = $region13
    $region12: #{tpu_custom_call.1} parent=1 // pred_region
      _
    $region13: #{tpu_custom_call.1} parent=1 // pred_fallthru
      _
    // Predicated region
    $region14: #{tpu_custom_call.1} parent=1 // pred_check
      _
    $region15: #{tpu_custom_call.1} parent=1 // pred_check_branch
      %26 = sbr.rel (0) target = $region17
    $region16: #{tpu_custom_call.1} parent=1 // pred_region
      _
    $region17: #{tpu_custom_call.1} parent=1 // pred_fallthru
      _
    // Predicated region
    $region18: #{tpu_custom_call.1} parent=1 // pred_check
      _
    $region19: #{tpu_custom_call.1} parent=1 // pred_check_branch
      %28 = sbr.rel (0) target = $region21
    $region20: #{tpu_custom_call.1} parent=1 // pred_region
      %29 = dma.done [#allocation3], 128
    $region21: #{tpu_custom_call.1} parent=1 // pred_fallthru
      _
    %s30 = smul.u32 0, 8
    %v31 = vlaneseq
    %v32 = vshrl.u32 %v31, 7
    %v33 = vstv %s30
    %v34 = vadd.s32 %v33, %v32
    %v35 = vcvt.s32.f32 %v34
    %v36 = vld [vmem:[%s1] sm:$0x1]
    %v38 = vlaneseq
    %v39 = vshrl.u32 %v38, 7
    %v40 = vsub.s32 0, %v39
    %v41 = vrot.slane %v36, %v40
    %v43 = vmul.f32 %v35, %v41
    %v44 = vand.u32 2147483647, %v43
    %vm45 = vcmp.le.f32.partialorder %v44, 0.7853982
    %vm46 = vcmp.lt.s32.totalorder %v43, 0
    %v47 = vand.u32 %v43, 2139095040
    %v48 = vshrl.u32 %v47, 23
    %v49 = vsub.s32 %v48, 127
    %v50 = vand.u32 2147483647, %v43
    %v51 = vand.u32 %v50, 8388607
    %v52 = vor.u32 %v51, 8388608
    %v53 = vsub.s32 0, %v52
    %v54 = vadd.s32 %v49, 1
    %vm55 = vcmp.gt.s32.totalorder %v54, 0
    %v56 = vsel %vm55, %v54, 0
    %v57 = vshrl.u32 %v56, 5
    %v58 = vand.u32 %v56, 31
    %v59 = vsub.s32 32, %v58
    %v60 = vshrl.u32 683565275, %v59
    %v61 = vshll.u32 683565275, %v58
    %v62 = vshrl.u32 2475754826, %v59
    %v63 = vor.u32 %v61, %v62
    %v64 = vshll.u32 2475754826, %v58
    %v65 = vshrl.u32 2131351028, %v59
    %v66 = vor.u32 %v64, %v65
    %v67 = vshll.u32 2131351028, %v58
    %v68 = vshrl.u32 2102212464, %v59
    %v69 = vor.u32 %v67, %v68
    %v70 = vshll.u32 2102212464, %v58
    %v71 = vshrl.u32 920167782, %v59
    %v72 = vor.u32 %v70, %v71
    %v73 = vshll.u32 920167782, %v58
    %v74 = vshrl.u32 1326507024, %v59
    %v75 = vor.u32 %v73, %v74
    %vm76 = vcmp.lt.s32.totalorder %v57, 1
    %vm77 = vcmp.lt.s32.totalorder %v57, 2
    %vm78 = vcmp.lt.s32.totalorder %v57, 3
    %vm79 = vcmp.lt.s32.totalorder %v57, 4
    %v80 = vsel %vm76, %v60, %v63
    %v81 = vsel %vm79, %v69, 2102212464
    %v82 = vsel %vm78, %v66, %v81
    %v83 = vsel %vm77, %v80, %v82
    %v84 = vsel %vm76, %v63, %v66
    %v85 = vsel %vm79, %v72, 920167782
    %v86 = vsel %vm78, %v69, %v85
    %v87 = vsel %vm77, %v84, %v86
    %v88 = vsel %vm76, %v66, %v69
    %v89 = vsel %vm79, %v75, 1326507024
    %v90 = vsel %vm78, %v72, %v89
    %v91 = vsel %vm77, %v88, %v90
    %v92 = vshll.u32 %v52, 8
    %v93 = vmul.u32.u64.compose %v92, %v91
    %v94 = vextract.low.u32 %v93
    %v95 = vextract.high.u32 %v93
    %v96 = vmul.u32.u64.compose %v92, %v87
    %v97 = vextract.low.u32 %v96
    %v98 = vextract.high.u32 %v96
    %v99 = vmul.u32 %v92, %v83
    %v100 = vadd.s32 %v95, %v97
    %vm101 = vc.u32 %v95, %v97
    %v102 = vadd.s32 %v98, 1
    %v103 = vsel %vm101, %v102, %v98
    %v104 = vadd.s32 %v99, %v103
    %v105 = vadd.s32 %v104, 536870912
    %v106 = vshrl.u32 %v105, 30
    %v107 = vshll.u32 %v106, 30
    %v108 = vsub.s32 %v104, %v107
    %vm109 = vcmp.lt.s32.totalorder %v108, 0
    %v110 = vsub.s32 0, %v108
    %v111 = vsel %vm109, %v110, %v108
    %v112 = vclz %v111
    %v113 = vsub.s32 %v112, 2
    %vm114 = vcmp.gt.s32.totalorder 0, %v113
    %v115 = vsel %vm114, 0, %v113
    %v116 = vsub.s32 32, %v115
    %v117 = vshll.u32 %v108, %v115
    %v118 = vshrl.u32 %v100, %v116
    %v119 = vor.u32 %v117, %v118
    %v120 = vsub.s32 4294967266, %v115
    %v121 = vadd.s32 %v120, 127
    %v122 = vshll.u32 %v121, 23
    %v123 = vor.u32 4788187, %v122
    %v124 = vand.u32 2147483647, %v123
    %v126 = vcvt.s32.f32 %v119
    %v127 = vmul.f32 %v126, %v124
    %v128 = vxor.u32 %v127, 2147483648
    %v129 = vsel %vm46, %v128, %v127
    %v130 = vsub.s32 4, %v106
    %v131 = vsel %vm46, %v130, %v106
    %v132 = vsel %vm45, %v43, %v129
    %v133 = vsel %vm45, 0, %v131
    %v134 = vcosq.f32.pop %v132
    %v135 = vsinq.f32.pop %v132
    %vm136 = vweird.f32 %v43
    %v137 = vadd.s32 %v133, 3
    %v138 = vand.u32 %v137, 3
    %vm139 = vcmp.lt.s32.totalorder %v138, 2
    %vm140 = vcmp.eq.s32.totalorder %v138, 0
    %v141 = vxor.u32 %v135, 2147483648
    %v142 = vsel %vm140, %v134, %v141
    %vm143 = vcmp.eq.s32.totalorder %v138, 2
    %v144 = vxor.u32 %v134, 2147483648
    %v145 = vsel %vm143, %v144, %v135
    %v146 = vsel %vm139, %v142, %v145
    %v147 = vsel %vm136, nan, %v146
    %v148 = vld [vmem:[%s2] sm:$0x1]
    %v150 = vlaneseq
    %v151 = vshrl.u32 %v150, 7
    %v152 = vsub.s32 0, %v151
    %v153 = vrot.slane %v148, %v152
    %v155 = vmul.f32 %v147, %v153
    %v156 = vand.u32 2147483647, %v43
    %vm157 = vcmp.le.f32.partialorder %v156, 0.7853982
    %vm158 = vcmp.lt.s32.totalorder %v43, 0
    %v159 = vand.u32 %v43, 2139095040
    %v160 = vshrl.u32 %v159, 23
    %v161 = vsub.s32 %v160, 127
    %v162 = vand.u32 2147483647, %v43
    %v163 = vand.u32 %v162, 8388607
    %v164 = vor.u32 %v163, 8388608
    %v165 = vsub.s32 0, %v164
    %v166 = vadd.s32 %v161, 1
    %vm167 = vcmp.gt.s32.totalorder %v166, 0
    %v168 = vsel %vm167, %v166, 0
    %v169 = vshrl.u32 %v168, 5
    %v170 = vand.u32 %v168, 31
    %v171 = vsub.s32 32, %v170
    %v172 = vshrl.u32 683565275, %v171
    %v173 = vshll.u32 683565275, %v170
    %v174 = vshrl.u32 2475754826, %v171
    %v175 = vor.u32 %v173, %v174
    %v176 = vshll.u32 2475754826, %v170
    %v177 = vshrl.u32 2131351028, %v171
    %v178 = vor.u32 %v176, %v177
    %v179 = vshll.u32 2131351028, %v170
    %v180 = vshrl.u32 2102212464, %v171
    %v181 = vor.u32 %v179, %v180
    %v182 = vshll.u32 2102212464, %v170
    %v183 = vshrl.u32 920167782, %v171
    %v184 = vor.u32 %v182, %v183
    %v185 = vshll.u32 920167782, %v170
    %v186 = vshrl.u32 1326507024, %v171
    %v187 = vor.u32 %v185, %v186
    %vm188 = vcmp.lt.s32.totalorder %v169, 1
    %vm189 = vcmp.lt.s32.totalorder %v169, 2
    %vm190 = vcmp.lt.s32.totalorder %v169, 3
    %vm191 = vcmp.lt.s32.totalorder %v169, 4
    %v192 = vsel %vm188, %v172, %v175
    %v193 = vsel %vm191, %v181, 2102212464
    %v194 = vsel %vm190, %v178, %v193
    %v195 = vsel %vm189, %v192, %v194
    %v196 = vsel %vm188, %v175, %v178
    %v197 = vsel %vm191, %v184, 920167782
    %v198 = vsel %vm190, %v181, %v197
    %v199 = vsel %vm189, %v196, %v198
    %v200 = vsel %vm188, %v178, %v181
    %v201 = vsel %vm191, %v187, 1326507024
    %v202 = vsel %vm190, %v184, %v201
    %v203 = vsel %vm189, %v200, %v202
    %v204 = vshll.u32 %v164, 8
    %v205 = vmul.u32.u64.compose %v204, %v203
    %v206 = vextract.low.u32 %v205
    %v207 = vextract.high.u32 %v205
    %v208 = vmul.u32.u64.compose %v204, %v199
    %v209 = vextract.low.u32 %v208
    %v210 = vextract.high.u32 %v208
    %v211 = vmul.u32 %v204, %v195
    %v212 = vadd.s32 %v207, %v209
    %vm213 = vc.u32 %v207, %v209
    %v214 = vadd.s32 %v210, 1
    %v215 = vsel %vm213, %v214, %v210
    %v216 = vadd.s32 %v211, %v215
    %v217 = vadd.s32 %v216, 536870912
    %v218 = vshrl.u32 %v217, 30
    %v219 = vshll.u32 %v218, 30
    %v220 = vsub.s32 %v216, %v219
    %vm221 = vcmp.lt.s32.totalorder %v220, 0
    %v222 = vsub.s32 0, %v220
    %v223 = vsel %vm221, %v222, %v220
    %v224 = vclz %v223
    %v225 = vsub.s32 %v224, 2
    %vm226 = vcmp.gt.s32.totalorder 0, %v225
    %v227 = vsel %vm226, 0, %v225
    %v228 = vsub.s32 32, %v227
    %v229 = vshll.u32 %v220, %v227
    %v230 = vshrl.u32 %v212, %v228
    %v231 = vor.u32 %v229, %v230
    %v232 = vsub.s32 4294967266, %v227
    %v233 = vadd.s32 %v232, 127
    %v234 = vshll.u32 %v233, 23
    %v235 = vor.u32 4788187, %v234
    %v236 = vand.u32 2147483647, %v235
    %v238 = vcvt.s32.f32 %v231
    %v239 = vmul.f32 %v238, %v236
    %v240 = vxor.u32 %v239, 2147483648
    %v241 = vsel %vm158, %v240, %v239
    %v242 = vsub.s32 4, %v218
    %v243 = vsel %vm158, %v242, %v218
    %v244 = vsel %vm157, %v43, %v241
    %v245 = vsel %vm157, 0, %v243
    %v246 = vcosq.f32.pop %v244
    %v247 = vsinq.f32.pop %v244
    %vm248 = vweird.f32 %v43
    %v249 = vand.u32 %v245, 3
    %vm250 = vcmp.lt.s32.totalorder %v249, 2
    %vm251 = vcmp.eq.s32.totalorder %v249, 0
    %v252 = vxor.u32 %v247, 2147483648
    %v253 = vsel %vm251, %v246, %v252
    %vm254 = vcmp.eq.s32.totalorder %v249, 2
    %v255 = vxor.u32 %v246, 2147483648
    %v256 = vsel %vm254, %v255, %v247
    %v257 = vsel %vm250, %v253, %v256
    %v258 = vsel %vm248, nan, %v257
    %v259 = vld [vmem:[%s3] sm:$0x1]
    %v261 = vlaneseq
    %v262 = vshrl.u32 %v261, 7
    %v263 = vsub.s32 0, %v262
    %v264 = vrot.slane %v259, %v263
    %v266 = vmul.f32 %v258, %v264
    %v267 = vadd.f32 %v155, %v266
    %v268 = vld [vmem:[#allocation2] sm:$0xff]
    %v269 = vadd.f32 %v268, %v267
    %270 = vst [vmem:[#allocation5] sm:$0xff] %v269
    // Predicated region
    $region22: #{tpu_custom_call.1} parent=1 // pred_check
      _
    $region23: #{tpu_custom_call.1} parent=1 // pred_check_branch
      %272 = sbr.rel (0) target = $region25
    $region24: #{tpu_custom_call.1} parent=1 // pred_region
      %s274 = ssub.s32 128, 128
      %275 = vsyncadd [#allocation4], %s274
      %s277 = sshll.u32 [#allocation5], 4
      %s278 = int_to_ptr.vmem [resolvable:$true] %s277
      %280 = dma.vmem_to_hbm [thread:$0]  %s278, 128, %s4, [#allocation4]
    $region25: #{tpu_custom_call.1} parent=1 // pred_fallthru
      _
    // Predicated region
    $region26: #{tpu_custom_call.1} parent=1 // pred_check
      _
    $region27: #{tpu_custom_call.1} parent=1 // pred_check_branch
      %282 = sbr.rel (0) target = $region29
    $region28: #{tpu_custom_call.1} parent=1 // pred_region
      %283 = dma.done [#allocation4], 128
    $region29: #{tpu_custom_call.1} parent=1 // pred_fallthru
      _
    %284 = vsyncpa [#allocation3], 1
    %285 = vsyncpa [#allocation4], 1

</llo_original>
